<compile_context>
chip_gen: v7x
topology: tpu7x:2x2x1
jax: 0.10.0
libtpu: 0.0.40
codegen_flags: <defaults>
</compile_context>

<pallas_src>
import functools
import math

import jax
import jax.numpy as jnp
from jax import lax
from jax.experimental import pallas as pl
from jax.experimental.pallas import tpu as pltpu


MASK_VALUE = -1e30  # finite sentinel instead of -inf (keeps softmax NaN-free)


def _compiler_params(dim_sem):
    # vmem_limit sized with v7x (64 MiB physical / 32 MiB scoped) in mind.
    return pltpu.CompilerParams(
        dimension_semantics=dim_sem,
        vmem_limit_bytes=32 * 1024 * 1024,
    )


# ----------------------------------------------------------------------------
# Kernel 1a: row-tiled linear projection  y = x @ w + b   (weight resident)
# ----------------------------------------------------------------------------
def _linear_kernel(x_ref, w_ref, b_ref, o_ref):
    x = x_ref[...].astype(jnp.bfloat16)                       # cast in-register
    y = jnp.dot(x, w_ref[...], preferred_element_type=jnp.float32)
    o_ref[...] = (y + b_ref[...]).astype(o_ref.dtype)


def linear(x, w, b, *, block_m=256):
    M, d_in = x.shape
    d_out = w.shape[1]
    tm = min(block_m, M)
    return pl.pallas_call(
        _linear_kernel,
        grid=(pl.cdiv(M, tm),),
        out_shape=jax.ShapeDtypeStruct((M, d_out), jnp.bfloat16),
        in_specs=[
            pl.BlockSpec((tm, d_in), lambda i: (i, 0)),
            pl.BlockSpec((d_in, d_out), lambda i: (0, 0)),    # stays resident
            pl.BlockSpec((1, d_out), lambda i: (0, 0)),
        ],
        out_specs=pl.BlockSpec((tm, d_out), lambda i: (i, 0)),
        compiler_params=_compiler_params(("parallel",)),
    )(x, w, b)


# ----------------------------------------------------------------------------
# Kernel 1b: fused Q/K/V projection (self-attention: read activations once)
# ----------------------------------------------------------------------------
def _qkv_kernel(x_ref, wq_ref, wk_ref, wv_ref, bq_ref, bk_ref, bv_ref,
                oq_ref, ok_ref, ov_ref):
    x = x_ref[...].astype(jnp.bfloat16)
    oq_ref[...] = (jnp.dot(x, wq_ref[...], preferred_element_type=jnp.float32)
                   + bq_ref[...]).astype(oq_ref.dtype)
    ok_ref[...] = (jnp.dot(x, wk_ref[...], preferred_element_type=jnp.float32)
                   + bk_ref[...]).astype(ok_ref.dtype)
    ov_ref[...] = (jnp.dot(x, wv_ref[...], preferred_element_type=jnp.float32)
                   + bv_ref[...]).astype(ov_ref.dtype)


def qkv_projection(x, wq, wk, wv, bq, bk, bv, *, block_m=256):
    M, d_in = x.shape
    dq, dk, dv = wq.shape[1], wk.shape[1], wv.shape[1]
    tm = min(block_m, M)
    return pl.pallas_call(
        _qkv_kernel,
        grid=(pl.cdiv(M, tm),),
        out_shape=(
            jax.ShapeDtypeStruct((M, dq), jnp.bfloat16),
            jax.ShapeDtypeStruct((M, dk), jnp.bfloat16),
            jax.ShapeDtypeStruct((M, dv), jnp.bfloat16),
        ),
        in_specs=[
            pl.BlockSpec((tm, d_in), lambda i: (i, 0)),
            pl.BlockSpec((d_in, dq), lambda i: (0, 0)),
            pl.BlockSpec((d_in, dk), lambda i: (0, 0)),
            pl.BlockSpec((d_in, dv), lambda i: (0, 0)),
            pl.BlockSpec((1, dq), lambda i: (0, 0)),
            pl.BlockSpec((1, dk), lambda i: (0, 0)),
            pl.BlockSpec((1, dv), lambda i: (0, 0)),
        ],
        out_specs=(
            pl.BlockSpec((tm, dq), lambda i: (i, 0)),
            pl.BlockSpec((tm, dk), lambda i: (i, 0)),
            pl.BlockSpec((tm, dv), lambda i: (i, 0)),
        ),
        compiler_params=_compiler_params(("parallel",)),
    )(x, wq, wk, wv, bq, bk, bv)


# ----------------------------------------------------------------------------
# Kernel 2a: attention WITH probability output (exact softmax, Lq tiled,
# full Lk per step).  Heads are sliced in-register; output is a lane-dense
# (tq, H*d_v) slab so no HBM transpose / head-merge is needed afterwards.
# ----------------------------------------------------------------------------
def _attn_full_kernel(q_ref, k_ref, v_ref, m_ref, o_ref, a_ref, *,
                      n_head, d_k, d_v, inv_temp):
    q_all = q_ref[0]                                   # (tq, H*d_k) bf16
    k_all = k_ref[0]                                   # (Lk, H*d_k) bf16
    v_all = v_ref[0]                                   # (Lk, H*d_v) bf16
    masked = m_ref[0].astype(jnp.float32) != 0.0       # (tq, Lk) bool

    head_outs = []
    for h in range(n_head):
        qh = q_all[:, h * d_k:(h + 1) * d_k]
        kh = k_all[:, h * d_k:(h + 1) * d_k]
        vh = v_all[:, h * d_v:(h + 1) * d_v]
        # contract last dims directly -- no materialized K transpose
        s = lax.dot_general(qh, kh, (((1,), (1,)), ((), ())),
                            preferred_element_type=jnp.float32) * inv_temp
        s = jnp.where(masked, MASK_VALUE, s)
        s_max = jnp.max(s, axis=-1, keepdims=True)
        e = jnp.exp(s - s_max)
        p = e * pl.reciprocal(jnp.sum(e, axis=-1, keepdims=True), approx=False)
        a_ref[h, 0] = p                                # f32 probabilities
        head_outs.append(jnp.dot(p.astype(jnp.bfloat16), vh,
                                 preferred_element_type=jnp.float32))
    # single wide (unmasked) store of all heads
    o_ref[0] = jnp.concatenate(head_outs, axis=-1).astype(o_ref.dtype)


def attention_with_probs(qp, kp, vp, mask_i8, *, n_head, d_k, d_v, inv_temp,
                         block_q=256):
    B, Lq, _ = qp.shape
    _, Lk, _ = kp.shape
    tq = min(block_q, Lq)
    kernel = functools.partial(_attn_full_kernel, n_head=n_head, d_k=d_k,
                               d_v=d_v, inv_temp=inv_temp)
    out, attn = pl.pallas_call(
        kernel,
        grid=(B, pl.cdiv(Lq, tq)),
        out_shape=(
            jax.ShapeDtypeStruct((B, Lq, n_head * d_v), jnp.bfloat16),
            jax.ShapeDtypeStruct((n_head, B, Lq, Lk), jnp.float32),
        ),
        in_specs=[
            pl.BlockSpec((1, tq, n_head * d_k), lambda b, i: (b, i, 0)),
            pl.BlockSpec((1, Lk, n_head * d_k), lambda b, i: (b, 0, 0)),
            pl.BlockSpec((1, Lk, n_head * d_v), lambda b, i: (b, 0, 0)),
            # original (B, Lq, Lk) int8 mask -- not tiled by n_head
            pl.BlockSpec((1, tq, Lk), lambda b, i: (b, i, 0)),
        ],
        out_specs=(
            pl.BlockSpec((1, tq, n_head * d_v), lambda b, i: (b, i, 0)),
            pl.BlockSpec((n_head, 1, tq, Lk), lambda b, i: (0, b, i, 0)),
        ),
        compiler_params=_compiler_params(("parallel", "parallel")),
    )(qp, kp, vp, mask_i8)
    return out, attn


# ----------------------------------------------------------------------------
# Kernel 2b: flash-style attention (no probability output).  Lk is a reduction
# grid axis ("arbitrary") with online-softmax scratch accumulators in VMEM.
# ----------------------------------------------------------------------------
def _attn_flash_kernel(q_ref, k_ref, v_ref, m_ref, o_ref,
                       m_scr, l_scr, acc_scr, *,
                       n_head, d_k, d_v, inv_temp, seq_k):
    ki = pl.program_id(2)
    tq = q_ref.shape[1]
    tk = k_ref.shape[1]

    @pl.when(ki == 0)
    def _():
        m_scr[...] = jnp.full_like(m_scr, MASK_VALUE)
        l_scr[...] = jnp.zeros_like(l_scr)
        acc_scr[...] = jnp.zeros_like(acc_scr)

    q_all = q_ref[0]                                   # (tq, H*d_k) bf16
    k_all = k_ref[0]                                   # (tk, H*d_k) bf16
    v_all = v_ref[0]                                   # (tk, H*d_v) bf16

    col = ki * tk + lax.broadcasted_iota(jnp.int32, (tq, tk), 1)
    dead = jnp.logical_or(m_ref[0].astype(jnp.float32) != 0.0, col >= seq_k)

    for h in range(n_head):
        qh = q_all[:, h * d_k:(h + 1) * d_k]
        kh = k_all[:, h * d_k:(h + 1) * d_k]
        vh = v_all[:, h * d_v:(h + 1) * d_v]
        s = lax.dot_general(qh, kh, (((1,), (1,)), ((), ())),
                            preferred_element_type=jnp.float32) * inv_temp
        s = jnp.where(dead, MASK_VALUE, s)
        m_prev = m_scr[h]                              # (tq, 1)
        m_cur = jnp.maximum(m_prev, jnp.max(s, axis=-1, keepdims=True))
        alpha = jnp.exp(m_prev - m_cur)
        p = jnp.exp(s - m_cur)
        p = jnp.where(dead, 0.0, p)                    # guard padded/garbage cols
        l_scr[h] = alpha * l_scr[h] + jnp.sum(p, axis=-1, keepdims=True)
        acc_scr[h] = alpha * acc_scr[h] + jnp.dot(
            p.astype(jnp.bfloat16), vh, preferred_element_type=jnp.float32)
        m_scr[h] = m_cur

    @pl.when(ki == pl.num_programs(2) - 1)
    def _():
        outs = []
        for h in range(n_head):
            inv_l = pl.reciprocal(l_scr[h], approx=False)
            outs.append(acc_scr[h] * inv_l)
        o_ref[0] = jnp.concatenate(outs, axis=-1).astype(o_ref.dtype)


def attention_flash(qp, kp, vp, mask_i8, *, n_head, d_k, d_v, inv_temp,
                    block_q=256, block_k=512):
    B, Lq, _ = qp.shape
    _, Lk, _ = kp.shape
    tq = min(block_q, Lq)
    tk = min(block_k, Lk)
    kernel = functools.partial(_attn_flash_kernel, n_head=n_head, d_k=d_k,
                               d_v=d_v, inv_temp=inv_temp, seq_k=Lk)
    return pl.pallas_call(
        kernel,
        grid=(B, pl.cdiv(Lq, tq), pl.cdiv(Lk, tk)),
        out_shape=jax.ShapeDtypeStruct((B, Lq, n_head * d_v), jnp.bfloat16),
        in_specs=[
            pl.BlockSpec((1, tq, n_head * d_k), lambda b, i, j: (b, i, 0)),
            pl.BlockSpec((1, tk, n_head * d_k), lambda b, i, j: (b, j, 0)),
            pl.BlockSpec((1, tk, n_head * d_v), lambda b, i, j: (b, j, 0)),
            pl.BlockSpec((1, tq, tk), lambda b, i, j: (b, i, j)),
        ],
        out_specs=pl.BlockSpec((1, tq, n_head * d_v), lambda b, i, j: (b, i, 0)),
        scratch_shapes=[
            pltpu.VMEM((n_head, tq, 1), jnp.float32),      # running max
            pltpu.VMEM((n_head, tq, 1), jnp.float32),      # running sum
            pltpu.VMEM((n_head, tq, d_v), jnp.float32),    # accumulator
        ],
        compiler_params=_compiler_params(("parallel", "parallel", "arbitrary")),
    )(qp, kp, vp, mask_i8)


# ----------------------------------------------------------------------------
# Kernel 3: output fc + residual + RMSNorm (row-tiled, weight resident)
# ----------------------------------------------------------------------------
def _out_norm_kernel(x_ref, w_ref, b_ref, res_ref, scale_ref, o_ref, *, eps):
    y = jnp.dot(x_ref[...], w_ref[...], preferred_element_type=jnp.float32)
    z = y + b_ref[...] + res_ref[...]
    # RMSNorm exactly as the reference: x / (sqrt(mean(x^2)) + eps), scaled.
    x_std = jnp.sqrt(jnp.mean(z * z, axis=-1, keepdims=True))
    inv = pl.reciprocal(x_std + eps, approx=False)     # per-row, then multiply
    o_ref[...] = (scale_ref[...] * (z * inv)).astype(o_ref.dtype)


def out_proj_residual_rmsnorm(x, w, b, residual, scale, *, eps, block_m=256):
    M, d_in = x.shape
    d_model = w.shape[1]
    tm = min(block_m, M)
    kernel = functools.partial(_out_norm_kernel, eps=eps)
    return pl.pallas_call(
        kernel,
        grid=(pl.cdiv(M, tm),),
        out_shape=jax.ShapeDtypeStruct((M, d_model), jnp.float32),
        in_specs=[
            pl.BlockSpec((tm, d_in), lambda i: (i, 0)),
            pl.BlockSpec((d_in, d_model), lambda i: (0, 0)),
            pl.BlockSpec((1, d_model), lambda i: (0, 0)),
            pl.BlockSpec((tm, d_model), lambda i: (i, 0)),
            pl.BlockSpec((1, d_model), lambda i: (0, 0)),
        ],
        out_specs=pl.BlockSpec((tm, d_model), lambda i: (i, 0)),
        compiler_params=_compiler_params(("parallel",)),
    )(x, w, b, residual, scale)


# ----------------------------------------------------------------------------
# Parameter init (deterministic, mimics xavier_normal_ for weights)
# ----------------------------------------------------------------------------
def init_params(key, n_head, d_model, d_k, d_v):
    def xavier_normal(k, shape):
        fan_out, fan_in = shape                 # PyTorch Linear weight is (out, in)
        std = (2.0 / (fan_in + fan_out)) ** 0.5
        return std * jax.random.normal(k, shape, dtype=jnp.float32)

    ks = jax.random.split(key, 8)
    return {
        # stored as (in, out) = W^T, in bf16 for the MXU
        "w_qs": xavier_normal(ks[0], (n_head * d_k, d_model)).T.astype(jnp.bfloat16),
        "b_qs": 0.01 * jax.random.normal(ks[1], (1, n_head * d_k), jnp.float32),
        "w_ks": xavier_normal(ks[2], (n_head * d_k, d_model)).T.astype(jnp.bfloat16),
        "b_ks": 0.01 * jax.random.normal(ks[3], (1, n_head * d_k), jnp.float32),
        "w_vs": xavier_normal(ks[4], (n_head * d_v, d_model)).T.astype(jnp.bfloat16),
        "b_vs": 0.01 * jax.random.normal(ks[5], (1, n_head * d_v), jnp.float32),
        "w_fc": xavier_normal(ks[6], (d_model, n_head * d_v)).T.astype(jnp.bfloat16),
        "b_fc": 0.01 * jax.random.normal(ks[7], (1, d_model), jnp.float32),
        "ln_scale": jnp.ones((1, d_model), jnp.float32),
    }


# ----------------------------------------------------------------------------
# Full MultiHeadAttention forward (glue in plain JAX, hot paths in Pallas)
# ----------------------------------------------------------------------------
def multi_head_attention(params, q, k, v, mask, *, n_head, d_k, d_v,
                         eps=1e-8, return_attn=True):
    sz_b, len_q, d_model = q.shape
    _, len_k, _ = k.shape
    residual = q
    inv_temp = 1.0 / math.sqrt(float(d_k))

    # mask stays (B, Lq, Lk); int8 (not f32, not repeated n_head times)
    mask_i8 = mask.astype(jnp.int8)

    if (q is k) and (k is v):
        # self-attention: fused projection reads the activations once
        q2, k2, v2 = qkv_projection(
            q.reshape(sz_b * len_q, d_model),
            params["w_qs"], params["w_ks"], params["w_vs"],
            params["b_qs"], params["b_ks"], params["b_vs"])
        q_p = q2.reshape(sz_b, len_q, n_head * d_k)
        k_p = k2.reshape(sz_b, len_q, n_head * d_k)
        v_p = v2.reshape(sz_b, len_q, n_head * d_v)
    else:
        q_p = linear(q.reshape(sz_b * len_q, d_model),
                     params["w_qs"], params["b_qs"]).reshape(sz_b, len_q, n_head * d_k)
        k_p = linear(k.reshape(sz_b * len_k, d_model),
                     params["w_ks"], params["b_ks"]).reshape(sz_b, len_k, n_head * d_k)
        v_p = linear(v.reshape(sz_b * len_k, d_model),
                     params["w_vs"], params["b_vs"]).reshape(sz_b, len_k, n_head * d_v)

    if return_attn:
        ctx, attn4 = attention_with_probs(q_p, k_p, v_p, mask_i8,
                                          n_head=n_head, d_k=d_k, d_v=d_v,
                                          inv_temp=inv_temp)
        attn = attn4.reshape(n_head * sz_b, len_q, len_k)   # head-major, free reshape
    else:
        ctx = attention_flash(q_p, k_p, v_p, mask_i8,
                              n_head=n_head, d_k=d_k, d_v=d_v,
                              inv_temp=inv_temp)
        attn = None

    # ctx is already (B, Lq, H*d_v) -- no transpose needed.
    # fc + (dropout == identity at eval) + residual + RMSNorm, fused in Pallas.
    out2d = out_proj_residual_rmsnorm(
        ctx.reshape(sz_b * len_q, n_head * d_v),
        params["w_fc"], params["b_fc"],
        residual.reshape(sz_b * len_q, d_model),
        params["ln_scale"], eps=eps)
    return out2d.reshape(sz_b, len_q, d_model), attn


if __name__ == "__main__":
    n_head, d_model, d_k, d_v = 2, 32, 16, 16
    sz_b, seq = 2, 8

    key = jax.random.PRNGKey(0)
    kp, kx, kk, kv = jax.random.split(key, 4)
    params = init_params(kp, n_head, d_model, d_k, d_v)

    x = jax.random.normal(kx, (sz_b, seq, d_model), dtype=jnp.float32)
    k_in = jax.random.normal(kk, (sz_b, seq, d_model), dtype=jnp.float32)
    v_in = jax.random.normal(kv, (sz_b, seq, d_model), dtype=jnp.float32)

    # padding-style mask: mask out the last 2 key positions of batch element 1
    mask = jnp.zeros((sz_b, seq, seq), dtype=jnp.int32)
    mask = mask.at[1, :, -2:].set(1)

    # 1) self-attention, with attention probabilities (module semantics)
    out, attn = multi_head_attention(params, x, x, x, mask,
                                     n_head=n_head, d_k=d_k, d_v=d_v,
                                     return_attn=True)
    jax.block_until_ready((out, attn))
    assert out.shape == (sz_b, seq, d_model)
    assert attn.shape == (n_head * sz_b, seq, seq)
    assert float(jnp.max(jnp.abs(jnp.sum(attn, axis=-1) - 1.0))) < 1e-3
    assert float(jnp.max(attn[1, :, -2:])) < 1e-6   # masked keys get ~0 prob

    # 2) same inputs through the flash (Lk-tiled, no-probs) path; must agree
    out_flash, _ = multi_head_attention(params, x, x, x, mask,
                                        n_head=n_head, d_k=d_k, d_v=d_v,
                                        return_attn=False)
    jax.block_until_ready(out_flash)
    assert jnp.allclose(out, out_flash, atol=5e-2, rtol=5e-2)

    # 3) cross-attention (distinct k/v) exercises the un-fused projection path
    out_x, _ = multi_head_attention(params, x, k_in, v_in, mask,
                                    n_head=n_head, d_k=d_k, d_v=d_v,
                                    return_attn=False)
    jax.block_until_ready(out_x)
    assert out_x.shape == (sz_b, seq, d_model)

    print("KERNEL_OK")
</pallas_src>

<mosaic_0001>
module attributes {stable_mosaic.version = 11 : i64} {
  func.func @_qkv_kernel(%arg0: i32, %arg1: memref<16x32xf32, #tpu.memory_space<vmem>>, %arg2: memref<32x32xbf16, #tpu.memory_space<vmem>>, %arg3: memref<32x32xbf16, #tpu.memory_space<vmem>>, %arg4: memref<32x32xbf16, #tpu.memory_space<vmem>>, %arg5: memref<1x32xf32, #tpu.memory_space<vmem>>, %arg6: memref<1x32xf32, #tpu.memory_space<vmem>>, %arg7: memref<1x32xf32, #tpu.memory_space<vmem>>, %arg8: memref<16x32xbf16, #tpu.memory_space<vmem>>, %arg9: memref<16x32xbf16, #tpu.memory_space<vmem>>, %arg10: memref<16x32xbf16, #tpu.memory_space<vmem>>) attributes {dimension_semantics = [#tpu.dimension_semantics<parallel>], iteration_bounds = array<i64: 1>, scalar_prefetch = 0 : i64, scratch_operands = 0 : i64, tpu.core_type = #tpu.core_type<tc>, window_params = [{transform_indices = @transform_0, window_bounds = array<i64: 16, 32>}, {pipeline_mode = #tpu.pipeline_mode<synchronous>, transform_indices = @transform_1, window_bounds = array<i64: 32, 32>}, {pipeline_mode = #tpu.pipeline_mode<synchronous>, transform_indices = @transform_2, window_bounds = array<i64: 32, 32>}, {pipeline_mode = #tpu.pipeline_mode<synchronous>, transform_indices = @transform_3, window_bounds = array<i64: 32, 32>}, {pipeline_mode = #tpu.pipeline_mode<synchronous>, transform_indices = @transform_4, window_bounds = array<i64: 1, 32>}, {pipeline_mode = #tpu.pipeline_mode<synchronous>, transform_indices = @transform_5, window_bounds = array<i64: 1, 32>}, {pipeline_mode = #tpu.pipeline_mode<synchronous>, transform_indices = @transform_6, window_bounds = array<i64: 1, 32>}, {transform_indices = @transform_7, window_bounds = array<i64: 16, 32>}, {transform_indices = @transform_8, window_bounds = array<i64: 16, 32>}, {transform_indices = @transform_9, window_bounds = array<i64: 16, 32>}]} {
    %c0 = arith.constant 0 : index
    %c0_0 = arith.constant 0 : index
    %0 = vector.load %arg1[%c0, %c0_0] : memref<16x32xf32, #tpu.memory_space<vmem>>, vector<16x32xf32>
    %1 = arith.truncf %0 : vector<16x32xf32> to vector<16x32xbf16>
    %c0_1 = arith.constant 0 : index
    %c0_2 = arith.constant 0 : index
    %2 = vector.load %arg2[%c0_1, %c0_2] : memref<32x32xbf16, #tpu.memory_space<vmem>>, vector<32x32xbf16>
    %cst = arith.constant dense<0.000000e+00> : vector<16x32xf32>
    %3 = tpu.matmul %1, %2, %cst {dimension_numbers = #tpu.dot_dimension_numbers<[1], [0], [0], [1], [0, 0, 1, 1], [], []>} : vector<16x32xbf16>, vector<32x32xbf16>, vector<16x32xf32> -> vector<16x32xf32>
    %c0_3 = arith.constant 0 : index
    %c0_4 = arith.constant 0 : index
    %4 = vector.load %arg5[%c0_3, %c0_4] : memref<1x32xf32, #tpu.memory_space<vmem>>, vector<1x32xf32>
    %5 = vector.broadcast %4 : vector<1x32xf32> to vector<16x32xf32>
    %6 = arith.addf %3, %5 : vector<16x32xf32>
    %7 = arith.truncf %6 : vector<16x32xf32> to vector<16x32xbf16>
    %c0_5 = arith.constant 0 : index
    %c0_6 = arith.constant 0 : index
    %8 = vector.load %arg8[%c0_5, %c0_6] : memref<16x32xbf16, #tpu.memory_space<vmem>>, vector<16x32xbf16>
    tpu.vector_store %arg8[%c0_5, %c0_6], %7 {strides = array<i32>} : memref<16x32xbf16, #tpu.memory_space<vmem>>, vector<16x32xbf16>,
    %c0_7 = arith.constant 0 : index
    %c0_8 = arith.constant 0 : index
    %9 = vector.load %arg3[%c0_7, %c0_8] : memref<32x32xbf16, #tpu.memory_space<vmem>>, vector<32x32xbf16>
    %cst_9 = arith.constant dense<0.000000e+00> : vector<16x32xf32>
    %10 = tpu.matmul %1, %9, %cst_9 {dimension_numbers = #tpu.dot_dimension_numbers<[1], [0], [0], [1], [0, 0, 1, 1], [], []>} : vector<16x32xbf16>, vector<32x32xbf16>, vector<16x32xf32> -> vector<16x32xf32>
    %c0_10 = arith.constant 0 : index
    %c0_11 = arith.constant 0 : index
    %11 = vector.load %arg6[%c0_10, %c0_11] : memref<1x32xf32, #tpu.memory_space<vmem>>, vector<1x32xf32>
    %12 = vector.broadcast %11 : vector<1x32xf32> to vector<16x32xf32>
    %13 = arith.addf %10, %12 : vector<16x32xf32>
    %14 = arith.truncf %13 : vector<16x32xf32> to vector<16x32xbf16>
    %c0_12 = arith.constant 0 : index
    %c0_13 = arith.constant 0 : index
    %15 = vector.load %arg9[%c0_12, %c0_13] : memref<16x32xbf16, #tpu.memory_space<vmem>>, vector<16x32xbf16>
    tpu.vector_store %arg9[%c0_12, %c0_13], %14 {strides = array<i32>} : memref<16x32xbf16, #tpu.memory_space<vmem>>, vector<16x32xbf16>,
    %c0_14 = arith.constant 0 : index
    %c0_15 = arith.constant 0 : index
    %16 = vector.load %arg4[%c0_14, %c0_15] : memref<32x32xbf16, #tpu.memory_space<vmem>>, vector<32x32xbf16>
    %cst_16 = arith.constant dense<0.000000e+00> : vector<16x32xf32>
    %17 = tpu.matmul %1, %16, %cst_16 {dimension_numbers = #tpu.dot_dimension_numbers<[1], [0], [0], [1], [0, 0, 1, 1], [], []>} : vector<16x32xbf16>, vector<32x32xbf16>, vector<16x32xf32> -> vector<16x32xf32>
    %c0_17 = arith.constant 0 : index
    %c0_18 = arith.constant 0 : index
    %18 = vector.load %arg7[%c0_17, %c0_18] : memref<1x32xf32, #tpu.memory_space<vmem>>, vector<1x32xf32>
    %19 = vector.broadcast %18 : vector<1x32xf32> to vector<16x32xf32>
    %20 = arith.addf %17, %19 : vector<16x32xf32>
    %21 = arith.truncf %20 : vector<16x32xf32> to vector<16x32xbf16>
    %c0_19 = arith.constant 0 : index
    %c0_20 = arith.constant 0 : index
    %22 = vector.load %arg10[%c0_19, %c0_20] : memref<16x32xbf16, #tpu.memory_space<vmem>>, vector<16x32xbf16>
    tpu.vector_store %arg10[%c0_19, %c0_20], %21 {strides = array<i32>} : memref<16x32xbf16, #tpu.memory_space<vmem>>, vector<16x32xbf16>,
    return
  }
  func.func @transform_0(%arg0: i32) -> (i32, i32) {
    %c0_i32 = arith.constant 0 : i32
    %c0_i32_0 = arith.constant 0 : i32
    return %arg0, %c0_i32 : i32, i32
  }
  func.func @transform_1(%arg0: i32) -> (i32, i32) {
    %c0_i32 = arith.constant 0 : i32
    %c0_i32_0 = arith.constant 0 : i32
    %c0_i32_1 = arith.constant 0 : i32
    return %c0_i32, %c0_i32_0 : i32, i32
  }
  func.func @transform_2(%arg0: i32) -> (i32, i32) {
    %c0_i32 = arith.constant 0 : i32
    %c0_i32_0 = arith.constant 0 : i32
    %c0_i32_1 = arith.constant 0 : i32
    return %c0_i32, %c0_i32_0 : i32, i32
  }
  func.func @transform_3(%arg0: i32) -> (i32, i32) {
    %c0_i32 = arith.constant 0 : i32
    %c0_i32_0 = arith.constant 0 : i32
    %c0_i32_1 = arith.constant 0 : i32
    return %c0_i32, %c0_i32_0 : i32, i32
  }
  func.func @transform_4(%arg0: i32) -> (i32, i32) {
    %c0_i32 = arith.constant 0 : i32
    %c0_i32_0 = arith.constant 0 : i32
    %c0_i32_1 = arith.constant 0 : i32
    return %c0_i32, %c0_i32_0 : i32, i32
  }
  func.func @transform_5(%arg0: i32) -> (i32, i32) {
    %c0_i32 = arith.constant 0 : i32
    %c0_i32_0 = arith.constant 0 : i32
    %c0_i32_1 = arith.constant 0 : i32
    return %c0_i32, %c0_i32_0 : i32, i32
  }
  func.func @transform_6(%arg0: i32) -> (i32, i32) {
    %c0_i32 = arith.constant 0 : i32
    %c0_i32_0 = arith.constant 0 : i32
    %c0_i32_1 = arith.constant 0 : i32
    return %c0_i32, %c0_i32_0 : i32, i32
  }
  func.func @transform_7(%arg0: i32) -> (i32, i32) {
    %c0_i32 = arith.constant 0 : i32
    %c0_i32_0 = arith.constant 0 : i32
    return %arg0, %c0_i32 : i32, i32
  }
  func.func @transform_8(%arg0: i32) -> (i32, i32) {
    %c0_i32 = arith.constant 0 : i32
    %c0_i32_0 = arith.constant 0 : i32
    return %arg0, %c0_i32 : i32, i32
  }
  func.func @transform_9(%arg0: i32) -> (i32, i32) {
    %c0_i32 = arith.constant 0 : i32
    %c0_i32_0 = arith.constant 0 : i32
    return %arg0, %c0_i32 : i32, i32
  }
}

</mosaic_0001>

<llo_original>
// kernel: tpu_custom_call.1
$region0: #{tpu_custom_call.1}
  #allocation0 [shape = 'u32[]', space=smem, size = 0x4, offset = 0x4, fixed_abs, tag = 'smem constant byte address 0x4 - core index']
  #allocation1 [shape = 'u32[144,128]{1,0:T(1,128)}', space=vmem, size = 0x12000, scoped, tag = 'internal scratch']
  %s0 = inlined_call_operand.hbm [shape: f32[16,32], index: 0, kind: input, shape index: {}]
  %s1 = inlined_call_operand.hbm [shape: bf16[32,32], index: 1, kind: input, shape index: {}]
  %s2 = inlined_call_operand.hbm [shape: bf16[32,32], index: 2, kind: input, shape index: {}]
  %s3 = inlined_call_operand.hbm [shape: bf16[32,32], index: 3, kind: input, shape index: {}]
  %s4 = inlined_call_operand.vmem [shape: f32[1,32], index: 4, kind: input, shape index: {}]
  %s5 = inlined_call_operand.vmem [shape: f32[1,32], index: 5, kind: input, shape index: {}]
  %s6 = inlined_call_operand.vmem [shape: f32[1,32], index: 6, kind: input, shape index: {}]
  %s7 = inlined_call_operand.hbm [shape: bf16[16,32], index: 7, kind: output, shape index: {0}]
  %s8 = inlined_call_operand.hbm [shape: bf16[16,32], index: 8, kind: output, shape index: {1}]
  %s9 = inlined_call_operand.hbm [shape: bf16[16,32], index: 9, kind: output, shape index: {2}]
  %10 = xla_tuple %s7, %s8, %s9
  %s11 = sld [smem:[#allocation0]]
  $region70: #{tpu_custom_call.1} parent=0
    _
  %s13 = ssub.s32 1, %s11
  %s14 = scalar_select 0, %s13, %s11
  $region1: #{tpu_custom_call.1} parent=0
    #allocation2 [shape = 'u8[8192]{0}', space=vmem, size = 0x2000, scoped, tag = 'input window, operand 0, single buffered']
    #allocation3 [shape = 's32[1]{0}', space=sflag, size = 0x4, scoped, tag = 'scoped memory for tpu_custom_call.1']
    #allocation4 [shape = 's32[1]{0}', space=sflag, size = 0x4, scoped, tag = 'scoped memory for tpu_custom_call.1']
    #allocation5 [shape = 'u8[8192]{0}', space=vmem, size = 0x2000, scoped, tag = 'input window, operand 1, single buffered']
    #allocation6 [shape = 's32[1]{0}', space=sflag, size = 0x4, scoped, tag = 'scoped memory for tpu_custom_call.1']
    #allocation7 [shape = 'u8[8192]{0}', space=vmem, size = 0x2000, scoped, tag = 'input window, operand 2, single buffered']
    #allocation8 [shape = 'u8[8192]{0}', space=vmem, size = 0x2000, scoped, tag = 'input window, operand 3, single buffered']
    #allocation9 [shape = 's32[1]{0}', space=sflag, size = 0x4, scoped, tag = 'scoped memory for tpu_custom_call.1']
    #allocation10 [shape = 'u8[4096]{0}', space=vmem, size = 0x1000, scoped, tag = 'output window, operand 0, single buffered']
    #allocation11 [shape = 'u8[4096]{0}', space=vmem, size = 0x1000, scoped, tag = 'output window, operand 1, single buffered']
    #allocation12 [shape = 's32[1]{0}', space=sflag, size = 0x4, scoped, tag = 'scoped memory for tpu_custom_call.1']
    #allocation13 [shape = 'u8[4096]{0}', space=vmem, size = 0x1000, scoped, tag = 'output window, operand 2, single buffered']
    %15 = vsyncpa [#allocation3], 0
    %16 = vsyncpa [#allocation6], 0
    %17 = vsyncpa [#allocation9], 0
    %18 = vsyncpa [#allocation4], 0
    %19 = vsyncpa [#allocation12], 0
    // Predicated region
    $region2: #{tpu_custom_call.1} parent=1 // pred_check
      _
    $region3: #{tpu_custom_call.1} parent=1 // pred_check_branch
      %21 = sbr.rel (0) target = $region5
    $region4: #{tpu_custom_call.1} parent=1 // pred_region
      %s23 = ssub.s32 256, 256
      %24 = vsyncadd [#allocation3], %s23
      %s25 = sshll.u32 [#allocation2], 4
      %s26 = int_to_ptr.vmem [resolvable:$true] %s25
      %31 = dma.hbm_to_vmem [thread:$0]  %s0, 256, %s26, [#allocation3], 128, 128, 8
    $region5: #{tpu_custom_call.1} parent=1 // pred_fallthru
      _
    // Predicated region
    $region6: #{tpu_custom_call.1} parent=1 // pred_check
      _
    $region7: #{tpu_custom_call.1} parent=1 // pred_check_branch
      %33 = sbr.rel (0) target = $region9
    $region8: #{tpu_custom_call.1} parent=1 // pred_region
      %s35 = ssub.s32 256, 256
      %36 = vsyncadd [#allocation6], %s35
      %s37 = sshll.u32 [#allocation5], 4
      %s38 = int_to_ptr.vmem [resolvable:$true] %s37
      %43 = dma.hbm_to_vmem [thread:$0]  %s1, 256, %s38, [#allocation6], 64, 64, 4
    $region9: #{tpu_custom_call.1} parent=1 // pred_fallthru
      _
    // Predicated region
    $region10: #{tpu_custom_call.1} parent=1 // pred_check
      _
    $region11: #{tpu_custom_call.1} parent=1 // pred_check_branch
      %45 = sbr.rel (0) target = $region13
    $region12: #{tpu_custom_call.1} parent=1 // pred_region
      %s47 = ssub.s32 256, 256
      %48 = vsyncadd [#allocation6], %s47
      %s49 = sshll.u32 [#allocation7], 4
      %s50 = int_to_ptr.vmem [resolvable:$true] %s49
      %55 = dma.hbm_to_vmem [thread:$0]  %s2, 256, %s50, [#allocation6], 64, 64, 4
    $region13: #{tpu_custom_call.1} parent=1 // pred_fallthru
      _
    // Predicated region
    $region14: #{tpu_custom_call.1} parent=1 // pred_check
      _
    $region15: #{tpu_custom_call.1} parent=1 // pred_check_branch
      %57 = sbr.rel (0) target = $region17
    $region16: #{tpu_custom_call.1} parent=1 // pred_region
      %s59 = ssub.s32 256, 256
      %60 = vsyncadd [#allocation9], %s59
      %s61 = sshll.u32 [#allocation8], 4
      %s62 = int_to_ptr.vmem [resolvable:$true] %s61
      %67 = dma.hbm_to_vmem [thread:$0]  %s3, 256, %s62, [#allocation9], 64, 64, 4
    $region17: #{tpu_custom_call.1} parent=1 // pred_fallthru
      _
    // Predicated region
    $region18: #{tpu_custom_call.1} parent=1 // pred_check
      _
    $region19: #{tpu_custom_call.1} parent=1 // pred_check_branch
      %69 = sbr.rel (0) target = $region21
    $region20: #{tpu_custom_call.1} parent=1 // pred_region
      _
    $region21: #{tpu_custom_call.1} parent=1 // pred_fallthru
      _
    // Predicated region
    $region22: #{tpu_custom_call.1} parent=1 // pred_check
      _
    $region23: #{tpu_custom_call.1} parent=1 // pred_check_branch
      %71 = sbr.rel (0) target = $region25
    $region24: #{tpu_custom_call.1} parent=1 // pred_region
      _
    $region25: #{tpu_custom_call.1} parent=1 // pred_fallthru
      _
    // Predicated region
    $region26: #{tpu_custom_call.1} parent=1 // pred_check
      _
    $region27: #{tpu_custom_call.1} parent=1 // pred_check_branch
      %73 = sbr.rel (0) target = $region29
    $region28: #{tpu_custom_call.1} parent=1 // pred_region
      _
    $region29: #{tpu_custom_call.1} parent=1 // pred_fallthru
      _
    // Predicated region
    $region30: #{tpu_custom_call.1} parent=1 // pred_check
      _
    $region31: #{tpu_custom_call.1} parent=1 // pred_check_branch
      %75 = sbr.rel (0) target = $region33
    $region32: #{tpu_custom_call.1} parent=1 // pred_region
      %76 = dma.done [#allocation3], 256
    $region33: #{tpu_custom_call.1} parent=1 // pred_fallthru
      _
    // Predicated region
    $region34: #{tpu_custom_call.1} parent=1 // pred_check
      _
    $region35: #{tpu_custom_call.1} parent=1 // pred_check_branch
      %78 = sbr.rel (0) target = $region37
    $region36: #{tpu_custom_call.1} parent=1 // pred_region
      %79 = dma.done [#allocation6], 256
    $region37: #{tpu_custom_call.1} parent=1 // pred_fallthru
      _
    // Predicated region
    $region38: #{tpu_custom_call.1} parent=1 // pred_check
      _
    $region39: #{tpu_custom_call.1} parent=1 // pred_check_branch
      %81 = sbr.rel (0) target = $region41
    $region40: #{tpu_custom_call.1} parent=1 // pred_region
      %82 = dma.done [#allocation6], 256
    $region41: #{tpu_custom_call.1} parent=1 // pred_fallthru
      _
    // Predicated region
    $region42: #{tpu_custom_call.1} parent=1 // pred_check
      _
    $region43: #{tpu_custom_call.1} parent=1 // pred_check_branch
      %84 = sbr.rel (0) target = $region45
    $region44: #{tpu_custom_call.1} parent=1 // pred_region
      %85 = dma.done [#allocation9], 256
    $region45: #{tpu_custom_call.1} parent=1 // pred_fallthru
      _
    %v87 = vld [vmem:[#allocation2] sm:$0xff]
    %v88 = vld [vmem:[#allocation2 + $0x8] sm:$0xff]
    %v89 = vpack.c.bf16 %v88, %v87
    %v90 = vld [vmem:[#allocation5] sm:$0xf]
    %v91 = vld [vmem:[#allocation5 + $0x4] sm:$0xf]
    %v92 = vld [vmem:[#allocation5 + $0x8] sm:$0xf]
    %v93 = vld [vmem:[#allocation5 + $0xc] sm:$0xf]
    %v94 = vld [vmem:[%s4] sm:$0x1]
    %v96 = vlaneseq
    %v97 = vshrl.u32 %v96, 7
    %v98 = vsub.s32 0, %v97
    %v99 = vrot.slane %v94, %v98
    %v105 = vunpack.c.l.b16 %v90
    %v106 = vunpack.c.l.b16 %v91
    %v107 = vunpack.c.l.b16 %v92
    %v108 = vunpack.c.l.b16 %v93
    %v109 = vpack.c.b16 %v106, %v105
    %v110 = vpack.c.b16 %v108, %v107
    %vm113 = vcmask 261120
    %v115 = vsel %vm113, %v89, 0
    %117 = vmatprep.subr.bf16.mxu0 0
    %118 = vmatpush1.bf16.msra.mxu0 %v109
    %119 = vmatprep.subr.bf16.mxu0 0
    %120 = vmatpush1.bf16.msra.mxu0 %v110
    %121 = vmatprep.subr.bf16.mxu0 0
    %122 = vmatpush1.bf16.msra.mxu0 0
    %123 = vmatprep.subr.bf16.mxu0 0
    %124 = vmatpush1.bf16.msra.mxu0 0
    %125 = vmatprep.subr.bf16.mxu0 0
    %126 = vmatpush1.bf16.msra.mxu0 0
    %127 = vmatprep.subr.bf16.mxu0 0
    %128 = vmatpush1.bf16.msra.mxu0 0
    %129 = vmatprep.subr.bf16.mxu0 0
    %130 = vmatpush1.bf16.msra.mxu0 0
    %131 = vmatprep.subr.bf16.mxu0 0
    %132 = vmatpush1.bf16.msra.mxu0 0
    %133 = vmatprep.subr.bf16.mxu0 0
    %134 = vmatpush1.bf16.msra.mxu0 0
    %135 = vmatprep.subr.bf16.mxu0 0
    %136 = vmatpush1.bf16.msra.mxu0 0
    %137 = vmatprep.subr.bf16.mxu0 0
    %138 = vmatpush1.bf16.msra.mxu0 0
    %139 = vmatprep.subr.bf16.mxu0 0
    %140 = vmatpush1.bf16.msra.mxu0 0
    %141 = vmatprep.subr.bf16.mxu0 0
    %142 = vmatpush1.bf16.msra.mxu0 0
    %143 = vmatprep.subr.bf16.mxu0 0
    %144 = vmatpush1.bf16.msra.mxu0 0
    %145 = vmatprep.subr.bf16.mxu0 0
    %146 = vmatpush1.bf16.msra.mxu0 0
    %147 = vmatprep.subr.bf16.mxu0 0
    %148 = vmatpush1.bf16.msra.mxu0 0
    %149 = vmatprep.mubr.bf16.mxu0 0
    %150 = vmatmul.mubr.bf16.gmra.mrb[0].mxu0 %v115
    %v151 = vpop.f32.mrb[0].mxu0
    %v152 = vadd.f32 %v99, %v151
    %v153 = vpop.f32.mrb[0].mxu0
    %v154 = vpop.f32.mrb[0].mxu0
    %v155 = vadd.f32 %v99, %v154
    %v156 = vpop.f32.mrb[0].mxu0
    %157 = vdwg.mxu0
    %v158 = vpack.c.bf16 %v155, %v152
    %v160 = vunpack.c.l.b16 %v158
    %v161 = vunpack.c.h.b16 %v158
    %v162 = vpack.c.b16 %v160, %v160
    %v163 = vpack.c.b16 %v161, %v161
    %vm166 = vcmask 257024
    %167 = vst.msk [vmem:[#allocation10] sm:$0xf] %vm166, %v162
    %168 = vst.msk [vmem:[#allocation10 + $0x4] sm:$0xf] %vm166, %v163
    %v169 = vld [vmem:[#allocation7] sm:$0xf]
    %v170 = vld [vmem:[#allocation7 + $0x4] sm:$0xf]
    %v171 = vld [vmem:[#allocation7 + $0x8] sm:$0xf]
    %v172 = vld [vmem:[#allocation7 + $0xc] sm:$0xf]
    %v173 = vld [vmem:[%s5] sm:$0x1]
    %v175 = vlaneseq
    %v176 = vshrl.u32 %v175, 7
    %v177 = vsub.s32 0, %v176
    %v178 = vrot.slane %v173, %v177
    %v184 = vunpack.c.l.b16 %v169
    %v185 = vunpack.c.l.b16 %v170
    %v186 = vunpack.c.l.b16 %v171
    %v187 = vunpack.c.l.b16 %v172
    %v188 = vpack.c.b16 %v185, %v184
    %v189 = vpack.c.b16 %v187, %v186
    %192 = vmatprep.subr.bf16.mxu0 0
    %193 = vmatpush1.bf16.msra.mxu0 %v188
    %194 = vmatprep.subr.bf16.mxu0 0
    %195 = vmatpush1.bf16.msra.mxu0 %v189
    %196 = vmatprep.subr.bf16.mxu0 0
    %197 = vmatpush1.bf16.msra.mxu0 0
    %198 = vmatprep.subr.bf16.mxu0 0
    %199 = vmatpush1.bf16.msra.mxu0 0
    %200 = vmatprep.subr.bf16.mxu0 0
    %201 = vmatpush1.bf16.msra.mxu0 0
    %202 = vmatprep.subr.bf16.mxu0 0
    %203 = vmatpush1.bf16.msra.mxu0 0
    %204 = vmatprep.subr.bf16.mxu0 0
    %205 = vmatpush1.bf16.msra.mxu0 0
    %206 = vmatprep.subr.bf16.mxu0 0
    %207 = vmatpush1.bf16.msra.mxu0 0
    %208 = vmatprep.subr.bf16.mxu0 0
    %209 = vmatpush1.bf16.msra.mxu0 0
    %210 = vmatprep.subr.bf16.mxu0 0
    %211 = vmatpush1.bf16.msra.mxu0 0
    %212 = vmatprep.subr.bf16.mxu0 0
    %213 = vmatpush1.bf16.msra.mxu0 0
    %214 = vmatprep.subr.bf16.mxu0 0
    %215 = vmatpush1.bf16.msra.mxu0 0
    %216 = vmatprep.subr.bf16.mxu0 0
    %217 = vmatpush1.bf16.msra.mxu0 0
    %218 = vmatprep.subr.bf16.mxu0 0
    %219 = vmatpush1.bf16.msra.mxu0 0
    %220 = vmatprep.subr.bf16.mxu0 0
    %221 = vmatpush1.bf16.msra.mxu0 0
    %222 = vmatprep.subr.bf16.mxu0 0
    %223 = vmatpush1.bf16.msra.mxu0 0
    %224 = vmatprep.mubr.bf16.mxu0 0
    %225 = vmatmul.mubr.bf16.gmra.mrb[0].mxu0 %v115
    %v226 = vpop.f32.mrb[0].mxu0
    %v227 = vadd.f32 %v178, %v226
    %v228 = vpop.f32.mrb[0].mxu0
    %v229 = vpop.f32.mrb[0].mxu0
    %v230 = vadd.f32 %v178, %v229
    %v231 = vpop.f32.mrb[0].mxu0
    %232 = vdwg.mxu0
    %v233 = vpack.c.bf16 %v230, %v227
    %v235 = vunpack.c.l.b16 %v233
    %v236 = vunpack.c.h.b16 %v233
    %v237 = vpack.c.b16 %v235, %v235
    %v238 = vpack.c.b16 %v236, %v236
    %241 = vst.msk [vmem:[#allocation11] sm:$0xf] %vm166, %v237
    %242 = vst.msk [vmem:[#allocation11 + $0x4] sm:$0xf] %vm166, %v238
    %v243 = vld [vmem:[#allocation8] sm:$0xf]
    %v244 = vld [vmem:[#allocation8 + $0x4] sm:$0xf]
    %v245 = vld [vmem:[#allocation8 + $0x8] sm:$0xf]
    %v246 = vld [vmem:[#allocation8 + $0xc] sm:$0xf]
    %v247 = vld [vmem:[%s6] sm:$0x1]
    %v249 = vlaneseq
    %v250 = vshrl.u32 %v249, 7
    %v251 = vsub.s32 0, %v250
    %v252 = vrot.slane %v247, %v251
    %v258 = vunpack.c.l.b16 %v243
    %v259 = vunpack.c.l.b16 %v244
    %v260 = vunpack.c.l.b16 %v245
    %v261 = vunpack.c.l.b16 %v246
    %v262 = vpack.c.b16 %v259, %v258
    %v263 = vpack.c.b16 %v261, %v260
    %266 = vmatprep.subr.bf16.mxu0 0
    %267 = vmatpush1.bf16.msra.mxu0 %v262
    %268 = vmatprep.subr.bf16.mxu0 0
    %269 = vmatpush1.bf16.msra.mxu0 %v263
    %270 = vmatprep.subr.bf16.mxu0 0
    %271 = vmatpush1.bf16.msra.mxu0 0
    %272 = vmatprep.subr.bf16.mxu0 0
    %273 = vmatpush1.bf16.msra.mxu0 0
    %274 = vmatprep.subr.bf16.mxu0 0
    %275 = vmatpush1.bf16.msra.mxu0 0
    %276 = vmatprep.subr.bf16.mxu0 0
    %277 = vmatpush1.bf16.msra.mxu0 0
    %278 = vmatprep.subr.bf16.mxu0 0
    %279 = vmatpush1.bf16.msra.mxu0 0
    %280 = vmatprep.subr.bf16.mxu0 0
    %281 = vmatpush1.bf16.msra.mxu0 0
    %282 = vmatprep.subr.bf16.mxu0 0
    %283 = vmatpush1.bf16.msra.mxu0 0
    %284 = vmatprep.subr.bf16.mxu0 0
    %285 = vmatpush1.bf16.msra.mxu0 0
    %286 = vmatprep.subr.bf16.mxu0 0
    %287 = vmatpush1.bf16.msra.mxu0 0
    %288 = vmatprep.subr.bf16.mxu0 0
    %289 = vmatpush1.bf16.msra.mxu0 0
    %290 = vmatprep.subr.bf16.mxu0 0
    %291 = vmatpush1.bf16.msra.mxu0 0
    %292 = vmatprep.subr.bf16.mxu0 0
    %293 = vmatpush1.bf16.msra.mxu0 0
    %294 = vmatprep.subr.bf16.mxu0 0
    %295 = vmatpush1.bf16.msra.mxu0 0
    %296 = vmatprep.subr.bf16.mxu0 0
    %297 = vmatpush1.bf16.msra.mxu0 0
    %298 = vmatprep.mubr.bf16.mxu0 0
    %299 = vmatmul.mubr.bf16.gmra.mrb[0].mxu0 %v115
    %v300 = vpop.f32.mrb[0].mxu0
    %v301 = vadd.f32 %v252, %v300
    %v302 = vpop.f32.mrb[0].mxu0
    %v303 = vpop.f32.mrb[0].mxu0
    %v304 = vadd.f32 %v252, %v303
    %v305 = vpop.f32.mrb[0].mxu0
    %306 = vdwg.mxu0
    %v307 = vpack.c.bf16 %v304, %v301
    %v309 = vunpack.c.l.b16 %v307
    %v310 = vunpack.c.h.b16 %v307
    %v311 = vpack.c.b16 %v309, %v309
    %v312 = vpack.c.b16 %v310, %v310
    %315 = vst.msk [vmem:[#allocation13] sm:$0xf] %vm166, %v311
    %316 = vst.msk [vmem:[#allocation13 + $0x4] sm:$0xf] %vm166, %v312
    // Predicated region
    $region46: #{tpu_custom_call.1} parent=1 // pred_check
      _
    $region47: #{tpu_custom_call.1} parent=1 // pred_check_branch
      %318 = sbr.rel (0) target = $region49
    $region48: #{tpu_custom_call.1} parent=1 // pred_region
      %s320 = ssub.s32 128, 128
      %321 = vsyncadd [#allocation4], %s320
      %s322 = sshll.u32 [#allocation10], 4
      %s323 = int_to_ptr.vmem [resolvable:$true] %s322
      %328 = dma.vmem_to_hbm [thread:$0]  %s323, 128, %s7, [#allocation4], 64, 64, 4
    $region49: #{tpu_custom_call.1} parent=1 // pred_fallthru
      _
    // Predicated region
    $region50: #{tpu_custom_call.1} parent=1 // pred_check
      _
    $region51: #{tpu_custom_call.1} parent=1 // pred_check_branch
      %330 = sbr.rel (0) target = $region53
    $region52: #{tpu_custom_call.1} parent=1 // pred_region
      %s332 = ssub.s32 128, 128
      %333 = vsyncadd [#allocation12], %s332
      %s334 = sshll.u32 [#allocation11], 4
      %s335 = int_to_ptr.vmem [resolvable:$true] %s334
      %340 = dma.vmem_to_hbm [thread:$0]  %s335, 128, %s8, [#allocation12], 64, 64, 4
    $region53: #{tpu_custom_call.1} parent=1 // pred_fallthru
      _
    // Predicated region
    $region54: #{tpu_custom_call.1} parent=1 // pred_check
      _
    $region55: #{tpu_custom_call.1} parent=1 // pred_check_branch
      %342 = sbr.rel (0) target = $region57
    $region56: #{tpu_custom_call.1} parent=1 // pred_region
      %s344 = ssub.s32 128, 128
      %345 = vsyncadd [#allocation12], %s344
      %s346 = sshll.u32 [#allocation13], 4
      %s347 = int_to_ptr.vmem [resolvable:$true] %s346
      %352 = dma.vmem_to_hbm [thread:$0]  %s347, 128, %s9, [#allocation12], 64, 64, 4
    $region57: #{tpu_custom_call.1} parent=1 // pred_fallthru
      _
    // Predicated region
    $region58: #{tpu_custom_call.1} parent=1 // pred_check
      _
    $region59: #{tpu_custom_call.1} parent=1 // pred_check_branch
      %354 = sbr.rel (0) target = $region61
    $region60: #{tpu_custom_call.1} parent=1 // pred_region
      %355 = dma.done [#allocation4], 128
    $region61: #{tpu_custom_call.1} parent=1 // pred_fallthru
      _
    // Predicated region
    $region62: #{tpu_custom_call.1} parent=1 // pred_check
      _
    $region63: #{tpu_custom_call.1} parent=1 // pred_check_branch
      %357 = sbr.rel (0) target = $region65
    $region64: #{tpu_custom_call.1} parent=1 // pred_region
      %358 = dma.done [#allocation12], 128
    $region65: #{tpu_custom_call.1} parent=1 // pred_fallthru
      _
    // Predicated region
    $region66: #{tpu_custom_call.1} parent=1 // pred_check
      _
    $region67: #{tpu_custom_call.1} parent=1 // pred_check_branch
      %360 = sbr.rel (0) target = $region69
    $region68: #{tpu_custom_call.1} parent=1 // pred_region
      %361 = dma.done [#allocation12], 128
    $region69: #{tpu_custom_call.1} parent=1 // pred_fallthru
      _
    %362 = vsyncpa [#allocation3], 1
    %363 = vsyncpa [#allocation6], 1
    %364 = vsyncpa [#allocation9], 1
    %365 = vsyncpa [#allocation4], 1
    %366 = vsyncpa [#allocation12], 1

</llo_original>
